<compile_context>
chip_gen: v7x
topology: tpu7x:2x2x1
jax: 0.10.0
libtpu: 0.0.40
codegen_flags: <defaults>
</compile_context>

<pallas_src>
import jax
import jax.numpy as jnp
from jax.experimental import pallas as pl
from jax.experimental.pallas import tpu as pltpu


def _ca_layer_kernel(x_ref, w1t_ref, b1_ref, w2_ref, b2_ref, o_ref):
    # x_ref / o_ref : (TB, C, HW)   TB batch images per grid step
    # w1t_ref       : (C, Cr)       conv_du[0] weight, transposed
    # b1_ref        : (1, Cr)
    # w2_ref        : (C, Cr)       conv_du[2] weight
    # b2_ref        : (1, C)
    xb = x_ref[...]
    inv_hw = jnp.float32(1.0 / xb.shape[-1])

    # AdaptiveAvgPool2d(1): mean over the spatial (lane) axis, f32 accumulation.
    pooled = jnp.sum(xb.astype(jnp.float32), axis=-1) * inv_hw        # (TB, C)

    # conv_du[0] (C -> C/r) + ReLU:
    #   h[b, r] = relu(sum_c pooled[b, c] * W1[r, c] + b1[r])
    h = jnp.sum(pooled[:, :, None] * w1t_ref[...][None, :, :], axis=1) + b1_ref[...]
    h = jnp.maximum(h, 0.0)                                            # (TB, Cr)

    # conv_du[2] (C/r -> C) + Sigmoid:
    #   y[b, c] = sigmoid(sum_r h[b, r] * W2[c, r] + b2[c])
    y = jnp.sum(h[:, None, :] * w2_ref[...][None, :, :], axis=2) + b2_ref[...]
    y = jax.nn.sigmoid(y)                                              # (TB, C)

    # Channel-wise gating, broadcast over the spatial lanes.
    o_ref[...] = (xb.astype(jnp.float32) * y[:, :, None]).astype(o_ref.dtype)


def _pick_batch_tile(B, C, HW, itemsize, vmem_budget_bytes=8 << 20):
    """Largest divisor of B whose in+out double-buffered block fits the budget."""
    per_image = C * HW * itemsize
    max_tb = max(1, vmem_budget_bytes // (4 * per_image))   # in + out, x2 buffers
    tb = 1
    for d in range(1, min(B, max_tb) + 1):
        if B % d == 0:
            tb = d
    return tb


def ca_layer(x, w1, b1, w2, b2):
    """x: (B, C, H, W); w1: (Cr, C); b1: (Cr,); w2: (C, Cr); b2: (C,) -> (B, C, H, W)."""
    B, C, H, W = x.shape
    Cr = w1.shape[0]
    HW = H * W

    x3 = x.reshape(B, C, HW)        # contiguous reshape: a view, not an HBM copy
    w1t = jnp.asarray(w1).T         # (C, Cr), tiny, resident in VMEM
    b1c = b1.reshape(1, Cr)
    b2c = b2.reshape(1, C)

    TB = _pick_batch_tile(B, C, HW, jnp.dtype(x.dtype).itemsize)

    out3 = pl.pallas_call(
        _ca_layer_kernel,
        out_shape=jax.ShapeDtypeStruct((B, C, HW), x.dtype),
        grid=(B // TB,),
        in_specs=[
            pl.BlockSpec((TB, C, HW), lambda b: (b, 0, 0)),   # TB images per step
            pl.BlockSpec((C, Cr), lambda b: (0, 0)),          # resident params
            pl.BlockSpec((1, Cr), lambda b: (0, 0)),
            pl.BlockSpec((C, Cr), lambda b: (0, 0)),
            pl.BlockSpec((1, C), lambda b: (0, 0)),
        ],
        out_specs=pl.BlockSpec((TB, C, HW), lambda b: (b, 0, 0)),
        compiler_params=pltpu.CompilerParams(
            dimension_semantics=("parallel",)),
    )(x3, w1t, b1c, w2, b2c)

    return out3.reshape(B, C, H, W)


def _reference(x, w1, b1, w2, b2):
    pooled = jnp.mean(x, axis=(2, 3))                     # (B, C)
    h = jnp.maximum(pooled @ w1.T + b1, 0.0)              # (B, Cr)
    y = jax.nn.sigmoid(h @ w2.T + b2)                     # (B, C)
    return x * y[:, :, None, None]


if __name__ == "__main__":
    # Small shapes consistent with the module: batch=2, channel=32, spatial=16,
    # reduction=16 (channel must be divisible by reduction).
    B, C, H, W = 2, 32, 16, 16
    reduction = 16
    Cr = C // reduction

    key = jax.random.PRNGKey(0)
    kx, k1, kb1, k2, kb2 = jax.random.split(key, 5)
    x = jax.random.normal(kx, (B, C, H, W), dtype=jnp.float32)
    # Conv2d(C, C//r, 1) weight -> (Cr, C); Conv2d(C//r, C, 1) weight -> (C, Cr).
    w1 = jax.random.normal(k1, (Cr, C), dtype=jnp.float32) * 0.1
    b1 = jax.random.normal(kb1, (Cr,), dtype=jnp.float32) * 0.1
    w2 = jax.random.normal(k2, (C, Cr), dtype=jnp.float32) * 0.1
    b2 = jax.random.normal(kb2, (C,), dtype=jnp.float32) * 0.1

    out = ca_layer(x, w1, b1, w2, b2)
    out = jax.block_until_ready(out)

    ref = _reference(x, w1, b1, w2, b2)
    assert out.shape == x.shape, out.shape
    assert jnp.allclose(out, ref, atol=1e-5, rtol=1e-5), float(
        jnp.max(jnp.abs(out - ref)))

    print("KERNEL_OK")
</pallas_src>

<mosaic_0001>
module attributes {stable_mosaic.version = 11 : i64} {
  func.func @_ca_layer_kernel(%arg0: i32, %arg1: memref<2x32x256xf32, #tpu.memory_space<vmem>>, %arg2: memref<32x2xf32, #tpu.memory_space<vmem>>, %arg3: memref<1x2xf32, #tpu.memory_space<vmem>>, %arg4: memref<32x2xf32, #tpu.memory_space<vmem>>, %arg5: memref<1x32xf32, #tpu.memory_space<vmem>>, %arg6: memref<2x32x256xf32, #tpu.memory_space<vmem>>) attributes {dimension_semantics = [#tpu.dimension_semantics<parallel>], iteration_bounds = array<i64: 1>, scalar_prefetch = 0 : i64, scratch_operands = 0 : i64, tpu.core_type = #tpu.core_type<tc>, window_params = [{transform_indices = @transform_0, window_bounds = array<i64: 2, 32, 256>}, {pipeline_mode = #tpu.pipeline_mode<synchronous>, transform_indices = @transform_1, window_bounds = array<i64: 32, 2>}, {pipeline_mode = #tpu.pipeline_mode<synchronous>, transform_indices = @transform_2, window_bounds = array<i64: 1, 2>}, {pipeline_mode = #tpu.pipeline_mode<synchronous>, transform_indices = @transform_3, window_bounds = array<i64: 32, 2>}, {pipeline_mode = #tpu.pipeline_mode<synchronous>, transform_indices = @transform_4, window_bounds = array<i64: 1, 32>}, {transform_indices = @transform_5, window_bounds = array<i64: 2, 32, 256>}]} {
    %c0 = arith.constant 0 : index
    %c0_0 = arith.constant 0 : index
    %c0_1 = arith.constant 0 : index
    %0 = vector.load %arg1[%c0, %c0_0, %c0_1] : memref<2x32x256xf32, #tpu.memory_space<vmem>>, vector<2x32x256xf32>
    %cst = arith.constant dense<0.000000e+00> : vector<2x32xf32>
    %1 = vector.multi_reduction <add>, %0, %cst [2] : vector<2x32x256xf32> to vector<2x32xf32>
    %cst_2 = arith.constant 3.906250e-03 : f32
    %2 = vector.broadcast %cst_2 : f32 to vector<2x32xf32>
    %3 = arith.mulf %1, %2 : vector<2x32xf32>
    %4 = vector.shape_cast %3 : vector<2x32xf32> to vector<2x32x1xf32>
    %c0_3 = arith.constant 0 : index
    %c0_4 = arith.constant 0 : index
    %5 = vector.load %arg2[%c0_3, %c0_4] : memref<32x2xf32, #tpu.memory_space<vmem>>, vector<32x2xf32>
    %6 = vector.shape_cast %5 : vector<32x2xf32> to vector<1x32x2xf32>
    %7 = vector.broadcast %4 : vector<2x32x1xf32> to vector<2x32x2xf32>
    %8 = vector.broadcast %6 : vector<1x32x2xf32> to vector<2x32x2xf32>
    %9 = arith.mulf %7, %8 : vector<2x32x2xf32>
    %cst_5 = arith.constant dense<0.000000e+00> : vector<2x2xf32>
    %10 = vector.multi_reduction <add>, %9, %cst_5 [1] : vector<2x32x2xf32> to vector<2x2xf32>
    %c0_6 = arith.constant 0 : index
    %c0_7 = arith.constant 0 : index
    %11 = vector.load %arg3[%c0_6, %c0_7] : memref<1x2xf32, #tpu.memory_space<vmem>>, vector<1x2xf32>
    %12 = vector.broadcast %11 : vector<1x2xf32> to vector<2x2xf32>
    %13 = arith.addf %10, %12 : vector<2x2xf32>
    %cst_8 = arith.constant 0.000000e+00 : f32
    %14 = vector.broadcast %cst_8 : f32 to vector<2x2xf32>
    %15 = arith.maximumf %13, %14 : vector<2x2xf32>
    %16 = vector.shape_cast %15 : vector<2x2xf32> to vector<2x1x2xf32>
    %c0_9 = arith.constant 0 : index
    %c0_10 = arith.constant 0 : index
    %17 = vector.load %arg4[%c0_9, %c0_10] : memref<32x2xf32, #tpu.memory_space<vmem>>, vector<32x2xf32>
    %18 = vector.shape_cast %17 : vector<32x2xf32> to vector<1x32x2xf32>
    %19 = vector.broadcast %16 : vector<2x1x2xf32> to vector<2x32x2xf32>
    %20 = vector.broadcast %18 : vector<1x32x2xf32> to vector<2x32x2xf32>
    %21 = arith.mulf %19, %20 : vector<2x32x2xf32>
    %cst_11 = arith.constant dense<0.000000e+00> : vector<2x32xf32>
    %22 = vector.multi_reduction <add>, %21, %cst_11 [2] : vector<2x32x2xf32> to vector<2x32xf32>
    %c0_12 = arith.constant 0 : index
    %c0_13 = arith.constant 0 : index
    %23 = vector.load %arg5[%c0_12, %c0_13] : memref<1x32xf32, #tpu.memory_space<vmem>>, vector<1x32xf32>
    %24 = vector.broadcast %23 : vector<1x32xf32> to vector<2x32xf32>
    %25 = arith.addf %22, %24 : vector<2x32xf32>
    %26 = arith.negf %25 : vector<2x32xf32>
    %27 = math.exp %26 : vector<2x32xf32>
    %cst_14 = arith.constant 1.000000e+00 : f32
    %28 = vector.broadcast %cst_14 : f32 to vector<2x32xf32>
    %29 = arith.addf %28, %27 : vector<2x32xf32>
    %30 = arith.divf %28, %29 : vector<2x32xf32>
    %31 = vector.shape_cast %30 : vector<2x32xf32> to vector<2x32x1xf32>
    %32 = vector.broadcast %31 : vector<2x32x1xf32> to vector<2x32x256xf32>
    %33 = arith.mulf %0, %32 : vector<2x32x256xf32>
    %c0_15 = arith.constant 0 : index
    %c0_16 = arith.constant 0 : index
    %c0_17 = arith.constant 0 : index
    %34 = vector.load %arg6[%c0_15, %c0_16, %c0_17] : memref<2x32x256xf32, #tpu.memory_space<vmem>>, vector<2x32x256xf32>
    tpu.vector_store %arg6[%c0_15, %c0_16, %c0_17], %33 {strides = array<i32>} : memref<2x32x256xf32, #tpu.memory_space<vmem>>, vector<2x32x256xf32>,
    return
  }
  func.func @transform_0(%arg0: i32) -> (i32, i32, i32) {
    %c0_i32 = arith.constant 0 : i32
    %c0_i32_0 = arith.constant 0 : i32
    %c0_i32_1 = arith.constant 0 : i32
    return %arg0, %c0_i32, %c0_i32_0 : i32, i32, i32
  }
  func.func @transform_1(%arg0: i32) -> (i32, i32) {
    %c0_i32 = arith.constant 0 : i32
    %c0_i32_0 = arith.constant 0 : i32
    %c0_i32_1 = arith.constant 0 : i32
    return %c0_i32, %c0_i32_0 : i32, i32
  }
  func.func @transform_2(%arg0: i32) -> (i32, i32) {
    %c0_i32 = arith.constant 0 : i32
    %c0_i32_0 = arith.constant 0 : i32
    %c0_i32_1 = arith.constant 0 : i32
    return %c0_i32, %c0_i32_0 : i32, i32
  }
  func.func @transform_3(%arg0: i32) -> (i32, i32) {
    %c0_i32 = arith.constant 0 : i32
    %c0_i32_0 = arith.constant 0 : i32
    %c0_i32_1 = arith.constant 0 : i32
    return %c0_i32, %c0_i32_0 : i32, i32
  }
  func.func @transform_4(%arg0: i32) -> (i32, i32) {
    %c0_i32 = arith.constant 0 : i32
    %c0_i32_0 = arith.constant 0 : i32
    %c0_i32_1 = arith.constant 0 : i32
    return %c0_i32, %c0_i32_0 : i32, i32
  }
  func.func @transform_5(%arg0: i32) -> (i32, i32, i32) {
    %c0_i32 = arith.constant 0 : i32
    %c0_i32_0 = arith.constant 0 : i32
    %c0_i32_1 = arith.constant 0 : i32
    return %arg0, %c0_i32, %c0_i32_0 : i32, i32, i32
  }
}

</mosaic_0001>

<llo_original>
// kernel: tpu_custom_call.1
$region0: #{tpu_custom_call.1}
  #allocation0 [shape = 'u32[]', space=smem, size = 0x4, offset = 0x4, fixed_abs, tag = 'smem constant byte address 0x4 - core index']
  #allocation1 [shape = 'u32[144,128]{1,0:T(1,128)}', space=vmem, size = 0x12000, scoped, tag = 'internal scratch']
  %s0 = inlined_call_operand.hbm [shape: f32[2,32,256], index: 0, kind: input, shape index: {}]
  %s1 = inlined_call_operand.vmem [shape: f32[32,2], index: 1, kind: input, shape index: {}]
  %s2 = inlined_call_operand.vmem [shape: f32[1,2], index: 2, kind: input, shape index: {}]
  %s3 = inlined_call_operand.vmem [shape: f32[32,2], index: 3, kind: input, shape index: {}]
  %s4 = inlined_call_operand.vmem [shape: f32[1,32], index: 4, kind: input, shape index: {}]
  %s5 = inlined_call_operand.hbm [shape: f32[2,32,256], index: 5, kind: output, shape index: {}]
  %s6 = sld [smem:[#allocation0]]
  $region34: #{tpu_custom_call.1} parent=0
    _
  %s8 = ssub.s32 1, %s6
  %s9 = scalar_select 0, %s8, %s6
  $region1: #{tpu_custom_call.1} parent=0
    #allocation2 [shape = 'u8[65536]{0}', space=vmem, size = 0x10000, scoped, tag = 'input window, operand 0, single buffered']
    #allocation3 [shape = 's32[1]{0}', space=sflag, size = 0x4, scoped, tag = 'scoped memory for tpu_custom_call.1']
    #allocation4 [shape = 's32[1]{0}', space=sflag, size = 0x4, scoped, tag = 'scoped memory for tpu_custom_call.1']
    #allocation5 [shape = 'u8[65536]{0}', space=vmem, size = 0x10000, scoped, tag = 'output window, operand 0, single buffered']
    %10 = vsyncpa [#allocation3], 0
    %11 = vsyncpa [#allocation4], 0
    // Predicated region
    $region2: #{tpu_custom_call.1} parent=1 // pred_check
      _
    $region3: #{tpu_custom_call.1} parent=1 // pred_check_branch
      %13 = sbr.rel (0) target = $region5
    $region4: #{tpu_custom_call.1} parent=1 // pred_region
      %s15 = ssub.s32 2048, 2048
      %16 = vsyncadd [#allocation3], %s15
      %s17 = sshll.u32 [#allocation2], 4
      %s18 = int_to_ptr.vmem [resolvable:$true] %s17
      %23 = dma.hbm_to_vmem [thread:$0]  %s0, 2048, %s18, [#allocation3], 256, 256, 16
    $region5: #{tpu_custom_call.1} parent=1 // pred_fallthru
      _
    // Predicated region
    $region6: #{tpu_custom_call.1} parent=1 // pred_check
      _
    $region7: #{tpu_custom_call.1} parent=1 // pred_check_branch
      %25 = sbr.rel (0) target = $region9
    $region8: #{tpu_custom_call.1} parent=1 // pred_region
      _
    $region9: #{tpu_custom_call.1} parent=1 // pred_fallthru
      _
    // Predicated region
    $region10: #{tpu_custom_call.1} parent=1 // pred_check
      _
    $region11: #{tpu_custom_call.1} parent=1 // pred_check_branch
      %27 = sbr.rel (0) target = $region13
    $region12: #{tpu_custom_call.1} parent=1 // pred_region
      _
    $region13: #{tpu_custom_call.1} parent=1 // pred_fallthru
      _
    // Predicated region
    $region14: #{tpu_custom_call.1} parent=1 // pred_check
      _
    $region15: #{tpu_custom_call.1} parent=1 // pred_check_branch
      %29 = sbr.rel (0) target = $region17
    $region16: #{tpu_custom_call.1} parent=1 // pred_region
      _
    $region17: #{tpu_custom_call.1} parent=1 // pred_fallthru
      _
    // Predicated region
    $region18: #{tpu_custom_call.1} parent=1 // pred_check
      _
    $region19: #{tpu_custom_call.1} parent=1 // pred_check_branch
      %31 = sbr.rel (0) target = $region21
    $region20: #{tpu_custom_call.1} parent=1 // pred_region
      _
    $region21: #{tpu_custom_call.1} parent=1 // pred_fallthru
      _
    // Predicated region
    $region22: #{tpu_custom_call.1} parent=1 // pred_check
      _
    $region23: #{tpu_custom_call.1} parent=1 // pred_check_branch
      %33 = sbr.rel (0) target = $region25
    $region24: #{tpu_custom_call.1} parent=1 // pred_region
      %34 = dma.done [#allocation3], 2048
    $region25: #{tpu_custom_call.1} parent=1 // pred_fallthru
      _
    %v35 = vld [vmem:[#allocation2] sm:$0xff]
    %v36 = vld [vmem:[#allocation2 + $0x8] sm:$0xff]
    %v37 = vld [vmem:[#allocation2 + $0x10] sm:$0xff]
    %v38 = vld [vmem:[#allocation2 + $0x18] sm:$0xff]
    %v39 = vld [vmem:[#allocation2 + $0x20] sm:$0xff]
    %v40 = vld [vmem:[#allocation2 + $0x28] sm:$0xff]
    %v41 = vld [vmem:[#allocation2 + $0x30] sm:$0xff]
    %v42 = vld [vmem:[#allocation2 + $0x38] sm:$0xff]
    %v43 = vld [vmem:[#allocation2 + $0x40] sm:$0xff]
    %v44 = vld [vmem:[#allocation2 + $0x48] sm:$0xff]
    %v45 = vld [vmem:[#allocation2 + $0x50] sm:$0xff]
    %v46 = vld [vmem:[#allocation2 + $0x58] sm:$0xff]
    %v47 = vld [vmem:[#allocation2 + $0x60] sm:$0xff]
    %v48 = vld [vmem:[#allocation2 + $0x68] sm:$0xff]
    %v49 = vld [vmem:[#allocation2 + $0x70] sm:$0xff]
    %v50 = vld [vmem:[#allocation2 + $0x78] sm:$0xff]
    %v51 = vadd.f32 %v35, %v36
    %52 = vadd.xlane.f32.xlu0 %v51
    %v53 = vpop.xlane.xlu0 %52
    %v54 = vadd.f32 %v37, %v38
    %55 = vadd.xlane.f32.xlu0 %v54
    %v56 = vpop.xlane.xlu0 %55
    %v57 = vadd.f32 %v39, %v40
    %58 = vadd.xlane.f32.xlu0 %v57
    %v59 = vpop.xlane.xlu0 %58
    %v60 = vadd.f32 %v41, %v42
    %61 = vadd.xlane.f32.xlu0 %v60
    %v62 = vpop.xlane.xlu0 %61
    %v63 = vadd.f32 %v43, %v44
    %64 = vadd.xlane.f32.xlu0 %v63
    %v65 = vpop.xlane.xlu0 %64
    %v66 = vadd.f32 %v45, %v46
    %67 = vadd.xlane.f32.xlu0 %v66
    %v68 = vpop.xlane.xlu0 %67
    %v69 = vadd.f32 %v47, %v48
    %70 = vadd.xlane.f32.xlu0 %v69
    %v71 = vpop.xlane.xlu0 %70
    %v72 = vadd.f32 %v49, %v50
    %73 = vadd.xlane.f32.xlu0 %v72
    %v74 = vpop.xlane.xlu0 %73
    %v75 = vmul.f32 %v53, 0.00390625
    %v76 = vmul.f32 %v56, 0.00390625
    %v77 = vmul.f32 %v59, 0.00390625
    %v78 = vmul.f32 %v62, 0.00390625
    %v79 = vmul.f32 %v65, 0.00390625
    %v80 = vmul.f32 %v68, 0.00390625
    %v81 = vmul.f32 %v71, 0.00390625
    %v82 = vmul.f32 %v74, 0.00390625
    %v83 = vld [vmem:[%s1] sm:$0xff]
    %v84 = vld [vmem:[%s1 + $0x8] sm:$0xff]
    %v85 = vld [vmem:[%s1 + $0x10] sm:$0xff]
    %v86 = vld [vmem:[%s1 + $0x18] sm:$0xff]
    %v87 = vmul.f32 %v75, %v83
    %v88 = vmul.f32 %v76, %v84
    %v89 = vmul.f32 %v77, %v85
    %v90 = vmul.f32 %v78, %v86
    %v91 = vmul.f32 %v79, %v83
    %v92 = vmul.f32 %v80, %v84
    %v93 = vmul.f32 %v81, %v85
    %v94 = vmul.f32 %v82, %v86
    %vm95 = vcmask 15360
    %v96 = vsel %vm95, %v87, 0.0
    %v97 = vsel %vm95, %v88, 0.0
    %v98 = vadd.f32 %v96, %v97
    %v99 = vsel %vm95, %v89, 0.0
    %v100 = vadd.f32 %v98, %v99
    %v101 = vsel %vm95, %v90, 0.0
    %v102 = vadd.f32 %v100, %v101
    %v103 = vrot.slane %v102, 4
    %v104 = vadd.f32 %v102, %v103
    %v105 = vrot.slane %v104, 2
    %v106 = vadd.f32 %v104, %v105
    %v107 = vrot.slane %v106, 1
    %v108 = vadd.f32 %v106, %v107
    %v109 = vsel %vm95, %v91, 0.0
    %v110 = vsel %vm95, %v92, 0.0
    %v111 = vadd.f32 %v109, %v110
    %v112 = vsel %vm95, %v93, 0.0
    %v113 = vadd.f32 %v111, %v112
    %v114 = vsel %vm95, %v94, 0.0
    %v115 = vadd.f32 %v113, %v114
    %v116 = vrot.slane %v115, 4
    %v117 = vadd.f32 %v115, %v116
    %v118 = vrot.slane %v117, 2
    %v119 = vadd.f32 %v117, %v118
    %v120 = vrot.slane %v119, 1
    %v121 = vadd.f32 %v119, %v120
    %v122 = vld [vmem:[%s2] sm:$0x1]
    %v124 = vlaneseq
    %v125 = vshrl.u32 %v124, 7
    %v126 = vsub.s32 0, %v125
    %v127 = vrot.slane %v122, %v126
    %v129 = vadd.f32 %v108, %v127
    %v130 = vadd.f32 %v121, %v127
    %v131 = vmax.f32 %v129, 0.0
    %v132 = vmax.f32 %v130, 0.0
    %v133 = vld [vmem:[%s3] sm:$0xff]
    %v134 = vld [vmem:[%s3 + $0x8] sm:$0xff]
    %v135 = vld [vmem:[%s3 + $0x10] sm:$0xff]
    %v136 = vld [vmem:[%s3 + $0x18] sm:$0xff]
    %v137 = vlaneseq
    %v138 = vshrl.u32 %v137, 7
    %v139 = vsub.s32 0, %v138
    %v140 = vrot.slane %v131, %v139
    %v141 = vlaneseq
    %v142 = vshrl.u32 %v141, 7
    %v143 = vsub.s32 0, %v142
    %v144 = vrot.slane %v132, %v143
    %v145 = vmul.f32 %v140, %v133
    %v146 = vmul.f32 %v140, %v134
    %v147 = vmul.f32 %v140, %v135
    %v148 = vmul.f32 %v140, %v136
    %v149 = vmul.f32 %v144, %v133
    %v150 = vmul.f32 %v144, %v134
    %v151 = vmul.f32 %v144, %v135
    %v152 = vmul.f32 %v144, %v136
    %v153 = vsel %vm95, %v145, 0.0
    %154 = vadd.xlane.f32.xlu0 %v153
    %v155 = vpop.xlane.xlu0 %154
    %v156 = vsel %vm95, %v146, 0.0
    %157 = vadd.xlane.f32.xlu0 %v156
    %v158 = vpop.xlane.xlu0 %157
    %v159 = vsel %vm95, %v147, 0.0
    %160 = vadd.xlane.f32.xlu0 %v159
    %v161 = vpop.xlane.xlu0 %160
    %v162 = vsel %vm95, %v148, 0.0
    %163 = vadd.xlane.f32.xlu0 %v162
    %v164 = vpop.xlane.xlu0 %163
    %v165 = vsel %vm95, %v149, 0.0
    %166 = vadd.xlane.f32.xlu0 %v165
    %v167 = vpop.xlane.xlu0 %166
    %v168 = vsel %vm95, %v150, 0.0
    %169 = vadd.xlane.f32.xlu0 %v168
    %v170 = vpop.xlane.xlu0 %169
    %v171 = vsel %vm95, %v151, 0.0
    %172 = vadd.xlane.f32.xlu0 %v171
    %v173 = vpop.xlane.xlu0 %172
    %v174 = vsel %vm95, %v152, 0.0
    %175 = vadd.xlane.f32.xlu0 %v174
    %v176 = vpop.xlane.xlu0 %175
    %v177 = vld [vmem:[%s4] sm:$0x1]
    %v179 = vlaneseq
    %v180 = vshrl.u32 %v179, 7
    %v181 = vsub.s32 0, %v180
    %v182 = vrot.slane %v177, %v181
    %184 = vbcast.lane.b32.xlu0 %v182, 256
    %v185 = vpop.permute.xlu0 %184
    %s187 = sor.u32 256, 8
    %188 = vbcast.lane.b32.xlu0 %v182, %s187
    %v189 = vpop.permute.xlu0 %188
    %s191 = sor.u32 256, 16
    %192 = vbcast.lane.b32.xlu0 %v182, %s191
    %v193 = vpop.permute.xlu0 %192
    %s195 = sor.u32 256, 24
    %196 = vbcast.lane.b32.xlu0 %v182, %s195
    %v197 = vpop.permute.xlu0 %196
    %v202 = vadd.f32 %v155, %v185
    %v203 = vadd.f32 %v158, %v189
    %v204 = vadd.f32 %v161, %v193
    %v205 = vadd.f32 %v164, %v197
    %v206 = vadd.f32 %v167, %v185
    %v207 = vadd.f32 %v170, %v189
    %v208 = vadd.f32 %v173, %v193
    %v209 = vadd.f32 %v176, %v197
    %v210 = vxor.u32 %v202, 2147483648
    %v211 = vxor.u32 %v203, 2147483648
    %v212 = vxor.u32 %v204, 2147483648
    %v213 = vxor.u32 %v205, 2147483648
    %v214 = vxor.u32 %v206, 2147483648
    %v215 = vxor.u32 %v207, 2147483648
    %v216 = vxor.u32 %v208, 2147483648
    %v217 = vxor.u32 %v209, 2147483648
    %v218 = vmul.f32 %v210, 1.442695
    %v219 = vpow.pop %v218
    %v220 = vmul.f32 %v211, 1.442695
    %v221 = vpow.pop %v220
    %v222 = vmul.f32 %v212, 1.442695
    %v223 = vpow.pop %v222
    %v224 = vmul.f32 %v213, 1.442695
    %v225 = vpow.pop %v224
    %v226 = vmul.f32 %v214, 1.442695
    %v227 = vpow.pop %v226
    %v228 = vmul.f32 %v215, 1.442695
    %v229 = vpow.pop %v228
    %v230 = vmul.f32 %v216, 1.442695
    %v231 = vpow.pop %v230
    %v232 = vmul.f32 %v217, 1.442695
    %v233 = vpow.pop %v232
    %v234 = vadd.f32 %v219, 1.0
    %v235 = vadd.f32 %v221, 1.0
    %v236 = vadd.f32 %v223, 1.0
    %v237 = vadd.f32 %v225, 1.0
    %v238 = vadd.f32 %v227, 1.0
    %v239 = vadd.f32 %v229, 1.0
    %v240 = vadd.f32 %v231, 1.0
    %v241 = vadd.f32 %v233, 1.0
    %v242 = vrcp.pop %v234
    %v243 = vmul.f32 1.0, %v242
    %v244 = vrcp.pop %v235
    %v245 = vmul.f32 1.0, %v244
    %v246 = vrcp.pop %v236
    %v247 = vmul.f32 1.0, %v246
    %v248 = vrcp.pop %v237
    %v249 = vmul.f32 1.0, %v248
    %v250 = vrcp.pop %v238
    %v251 = vmul.f32 1.0, %v250
    %v252 = vrcp.pop %v239
    %v253 = vmul.f32 1.0, %v252
    %v254 = vrcp.pop %v240
    %v255 = vmul.f32 1.0, %v254
    %v256 = vrcp.pop %v241
    %v257 = vmul.f32 1.0, %v256
    %259 = vset.pattern.permute.xlu0 0
    %260 = vperm.xlu0 %259, %v243
    %v261 = vpop.permute.xlu0 %260
    %264 = vset.pattern.permute.xlu0 0
    %265 = vperm.xlu0 %264, %v245
    %v266 = vpop.permute.xlu0 %265
    %269 = vset.pattern.permute.xlu0 0
    %270 = vperm.xlu0 %269, %v247
    %v271 = vpop.permute.xlu0 %270
    %274 = vset.pattern.permute.xlu0 0
    %275 = vperm.xlu0 %274, %v249
    %v276 = vpop.permute.xlu0 %275
    %279 = vset.pattern.permute.xlu0 0
    %280 = vperm.xlu0 %279, %v251
    %v281 = vpop.permute.xlu0 %280
    %284 = vset.pattern.permute.xlu0 0
    %285 = vperm.xlu0 %284, %v253
    %v286 = vpop.permute.xlu0 %285
    %289 = vset.pattern.permute.xlu0 0
    %290 = vperm.xlu0 %289, %v255
    %v291 = vpop.permute.xlu0 %290
    %294 = vset.pattern.permute.xlu0 0
    %295 = vperm.xlu0 %294, %v257
    %v296 = vpop.permute.xlu0 %295
    %v298 = vmul.f32 %v35, %v261
    %v299 = vmul.f32 %v36, %v261
    %v300 = vmul.f32 %v37, %v266
    %v301 = vmul.f32 %v38, %v266
    %v302 = vmul.f32 %v39, %v271
    %v303 = vmul.f32 %v40, %v271
    %v304 = vmul.f32 %v41, %v276
    %v305 = vmul.f32 %v42, %v276
    %v306 = vmul.f32 %v43, %v281
    %v307 = vmul.f32 %v44, %v281
    %v308 = vmul.f32 %v45, %v286
    %v309 = vmul.f32 %v46, %v286
    %v310 = vmul.f32 %v47, %v291
    %v311 = vmul.f32 %v48, %v291
    %v312 = vmul.f32 %v49, %v296
    %v313 = vmul.f32 %v50, %v296
    %314 = vst [vmem:[#allocation5] sm:$0xff] %v298
    %315 = vst [vmem:[#allocation5 + $0x8] sm:$0xff] %v299
    %316 = vst [vmem:[#allocation5 + $0x10] sm:$0xff] %v300
    %317 = vst [vmem:[#allocation5 + $0x18] sm:$0xff] %v301
    %318 = vst [vmem:[#allocation5 + $0x20] sm:$0xff] %v302
    %319 = vst [vmem:[#allocation5 + $0x28] sm:$0xff] %v303
    %320 = vst [vmem:[#allocation5 + $0x30] sm:$0xff] %v304
    %321 = vst [vmem:[#allocation5 + $0x38] sm:$0xff] %v305
    %322 = vst [vmem:[#allocation5 + $0x40] sm:$0xff] %v306
    %323 = vst [vmem:[#allocation5 + $0x48] sm:$0xff] %v307
    %324 = vst [vmem:[#allocation5 + $0x50] sm:$0xff] %v308
    %325 = vst [vmem:[#allocation5 + $0x58] sm:$0xff] %v309
    %326 = vst [vmem:[#allocation5 + $0x60] sm:$0xff] %v310
    %327 = vst [vmem:[#allocation5 + $0x68] sm:$0xff] %v311
    %328 = vst [vmem:[#allocation5 + $0x70] sm:$0xff] %v312
    %329 = vst [vmem:[#allocation5 + $0x78] sm:$0xff] %v313
    // Predicated region
    $region26: #{tpu_custom_call.1} parent=1 // pred_check
      _
    $region27: #{tpu_custom_call.1} parent=1 // pred_check_branch
      %331 = sbr.rel (0) target = $region29
    $region28: #{tpu_custom_call.1} parent=1 // pred_region
      %s333 = ssub.s32 2048, 2048
      %334 = vsyncadd [#allocation4], %s333
      %s335 = sshll.u32 [#allocation5], 4
      %s336 = int_to_ptr.vmem [resolvable:$true] %s335
      %341 = dma.vmem_to_hbm [thread:$0]  %s336, 2048, %s5, [#allocation4], 256, 256, 16
    $region29: #{tpu_custom_call.1} parent=1 // pred_fallthru
      _
    // Predicated region
    $region30: #{tpu_custom_call.1} parent=1 // pred_check
      _
    $region31: #{tpu_custom_call.1} parent=1 // pred_check_branch
      %343 = sbr.rel (0) target = $region33
    $region32: #{tpu_custom_call.1} parent=1 // pred_region
      %344 = dma.done [#allocation4], 2048
    $region33: #{tpu_custom_call.1} parent=1 // pred_fallthru
      _
    %345 = vsyncpa [#allocation3], 1
    %346 = vsyncpa [#allocation4], 1

</llo_original>
